<compile_context>
chip_gen: v5e
topology: v5e:2x2
jax: 0.10.0
libtpu: 0.0.40
codegen_flags: <defaults>
</compile_context>

<pallas_src>
import jax
import jax.numpy as jnp
from jax.experimental import pallas as pl
from jax.experimental.pallas import tpu as pltpu


# --------------------------------------------------------------------------
# Kernel
# --------------------------------------------------------------------------
def _timestep_embedding_kernel(x_ref, w1_ref, b1_ref, w2_ref, b2_ref, out_ref):
    # linear_1 (cond_proj already folded/stacked into w1); f32 MXU accumulation.
    # Activations are cast to the weight dtype so bf16 weights stay bf16 on the MXU.
    h = jnp.dot(x_ref[...].astype(w1_ref.dtype), w1_ref[...],
                preferred_element_type=jnp.float32)
    h = h + b1_ref[...].astype(jnp.float32)
    # SiLU kept in f32 (v5e has no bf16 VPU/EUP path).
    # TODO(synk): only act_fn='silu' / post_act_fn=None (the module defaults) are implemented.
    h = h * jax.nn.sigmoid(h)
    y = jnp.dot(h.astype(w2_ref.dtype), w2_ref[...],
                preferred_element_type=jnp.float32)
    y = y + b2_ref[...].astype(jnp.float32)
    out_ref[...] = y.astype(out_ref.dtype)


# --------------------------------------------------------------------------
# One-time parameter preparation (hoisted out of the per-call path)
# --------------------------------------------------------------------------
def prepare_timestep_embedding_params(params, *, weight_dtype=None):
    """Transpose weights to (in, out), reshape biases to (1, out), fold
    cond_proj into linear_1 and stack it under W1.  Call ONCE at load time.

    params (PyTorch nn.Linear convention):
      linear_1_w: (time_embed_dim, in_channels), linear_1_b: (time_embed_dim,)
      linear_2_w: (out_dim, time_embed_dim),     linear_2_b: (out_dim,)
      cond_proj_w (optional): (in_channels, cond_proj_dim), bias-free

    weight_dtype: e.g. jnp.bfloat16 halves weight DMA (the kernel is weight-DMA
    bound at realistic sizes).  Default None keeps the module's exact numerics.
    """
    w1_f32 = jnp.asarray(params["linear_1_w"]).T                 # (in, emb)
    b1 = jnp.asarray(params["linear_1_b"]).reshape(1, -1)        # (1, emb)
    w2 = jnp.asarray(params["linear_2_w"]).T                     # (emb, out)
    b2 = jnp.asarray(params["linear_2_b"]).reshape(1, -1)        # (1, out)

    w1 = w1_f32 if weight_dtype is None else w1_f32.astype(weight_dtype)
    if weight_dtype is not None:
        w2 = w2.astype(weight_dtype)

    prepared = {"w1": w1, "b1": b1, "w2": w2, "b2": b2}

    if params.get("cond_proj_w", None) is not None:
        wc = jnp.asarray(params["cond_proj_w"]).T                # (cond, in)
        # Fold: (x + c @ Wc) @ W1 == x @ W1 + c @ (Wc @ W1).  Product computed
        # in f32, quantized once afterwards.
        wc_fused = jnp.dot(wc, w1_f32,
                           preferred_element_type=jnp.float32).astype(w1.dtype)
        # Stack under W1 so the kernel runs ONE matmul on [sample | condition].
        prepared["w1_cond"] = jnp.concatenate([w1, wc_fused], axis=0)  # (in+cond, emb)
    return prepared


def _resident_spec(shape, index_map, buffer_count):
    """BlockSpec with an explicit buffer count (1 => keep resident, no double
    buffering).  Falls back to a plain BlockSpec on JAX versions without
    pipeline_mode support."""
    if buffer_count == 2:
        return pl.BlockSpec(shape, index_map)
    try:
        return pl.BlockSpec(shape, index_map,
                            pipeline_mode=pl.Buffered(buffer_count))
    except Exception:  # pragma: no cover - older JAX without pipeline_mode
        return pl.BlockSpec(shape, index_map)


# --------------------------------------------------------------------------
# Forward wrapper
# --------------------------------------------------------------------------
def timestep_embedding(sample, condition, prepared):
    """sample: (B, in_channels); condition: (B, cond_proj_dim) or None."""
    if condition is not None and "w1_cond" in prepared:
        # Single matmul over the stacked weight: [x | c] @ [[W1],[Wc@W1]].
        x = jnp.concatenate([sample, condition.astype(sample.dtype)], axis=1)
        w1 = prepared["w1_cond"]
    else:
        # (If a condition is passed but the module has no cond_proj, ignore it,
        # matching the pure-JAX reference.)
        x = sample
        w1 = prepared["w1"]
    b1, w2, b2 = prepared["b1"], prepared["w2"], prepared["b2"]

    B, K = x.shape
    emb = w1.shape[1]
    out_dim = w2.shape[1]
    out_dtype = sample.dtype

    # ---- batch tiling: bounded tile size, cdiv grid (handles any B) --------
    tb = min(B, 256)                    # full-B (< 256) or a multiple of 8
    grid_b = pl.cdiv(B, tb)

    # ---- out_dim tiling: lets v7x's 2 TCs split the dominant W2 DMA --------
    tn = out_dim
    for cand in (1024, 512, 256):
        if out_dim > cand and out_dim % cand == 0:
            tn = cand
            break
    grid_n = out_dim // tn

    # N axis leads (megacore "parallel"); batch is "arbitrary" so each core is
    # not forced to re-DMA the full weight set.
    grid = (grid_n, grid_b)

    w2_buf = 1 if grid_n == 1 else 2    # W2/b2 only constant when un-tiled

    in_specs = [
        pl.BlockSpec((tb, K), lambda j, i: (i, 0)),                    # x
        _resident_spec((K, emb), lambda j, i: (0, 0), 1),              # w1 (+cond)
        _resident_spec((1, emb), lambda j, i: (0, 0), 1),              # b1
        _resident_spec((emb, tn), lambda j, i: (0, j), w2_buf),        # w2
        _resident_spec((1, tn), lambda j, i: (0, j), w2_buf),          # b2
    ]
    out_specs = pl.BlockSpec((tb, tn), lambda j, i: (i, j))

    # ---- explicit VMEM budget (weights x buffers + pipelined act/out tiles) -
    w_resident = w1.size * w1.dtype.itemsize + b1.size * b1.dtype.itemsize
    w2_tile = emb * tn * w2.dtype.itemsize + tn * b2.dtype.itemsize
    x_tile = tb * K * x.dtype.itemsize
    o_tile = tb * tn * jnp.dtype(out_dtype).itemsize
    h_tile = tb * emb * 4                                   # f32 intermediate
    needed = (w_resident + w2_buf * w2_tile
              + 2 * (x_tile + o_tile) + 2 * h_tile)
    vmem_limit = int(min(max(2 * needed, 32 * 1024 * 1024), 56 * 1024 * 1024))

    cost = pl.CostEstimate(
        flops=2 * B * K * emb * grid_n + 2 * B * emb * out_dim,
        transcendentals=B * emb * grid_n,                    # sigmoid in SiLU
        bytes_accessed=(grid_n * x.size * x.dtype.itemsize
                        + w1.size * w1.dtype.itemsize
                        + b1.size * b1.dtype.itemsize
                        + w2.size * w2.dtype.itemsize
                        + b2.size * b2.dtype.itemsize
                        + B * out_dim * jnp.dtype(out_dtype).itemsize),
    )

    return pl.pallas_call(
        _timestep_embedding_kernel,
        out_shape=jax.ShapeDtypeStruct((B, out_dim), out_dtype),
        grid=grid,
        in_specs=in_specs,
        out_specs=out_specs,
        compiler_params=pltpu.CompilerParams(
            dimension_semantics=("parallel", "arbitrary"),
            vmem_limit_bytes=vmem_limit),
        cost_estimate=cost,
    )(x, w1, b1, w2, b2)


# --------------------------------------------------------------------------
# Pure-JAX reference (matches the PyTorch module)
# --------------------------------------------------------------------------
def _reference(sample, condition, params):
    x = sample
    if condition is not None and params.get("cond_proj_w", None) is not None:
        x = x + condition @ params["cond_proj_w"].T
    h = x @ params["linear_1_w"].T + params["linear_1_b"]
    h = h * jax.nn.sigmoid(h)
    return h @ params["linear_2_w"].T + params["linear_2_b"]


if __name__ == "__main__":
    # Small, module-consistent config.
    B = 8
    in_channels = 32
    time_embed_dim = 128
    cond_proj_dim = 16
    out_dim = time_embed_dim  # out_dim=None -> time_embed_dim

    key = jax.random.PRNGKey(0)
    k = jax.random.split(key, 7)

    def uinit(rng, shape, fan_in):
        bound = 1.0 / jnp.sqrt(fan_in)
        return jax.random.uniform(rng, shape, jnp.float32, -bound, bound)

    # Deterministic parameter init (PyTorch nn.Linear-style uniform bounds).
    params = {
        "cond_proj_w": uinit(k[0], (in_channels, cond_proj_dim), cond_proj_dim),
        "linear_1_w":  uinit(k[1], (time_embed_dim, in_channels), in_channels),
        "linear_1_b":  uinit(k[2], (time_embed_dim,), in_channels),
        "linear_2_w":  uinit(k[3], (out_dim, time_embed_dim), time_embed_dim),
        "linear_2_b":  uinit(k[4], (out_dim,), time_embed_dim),
    }

    sample = jax.random.normal(k[5], (B, in_channels), jnp.float32)
    condition = jax.random.normal(k[6], (B, cond_proj_dim), jnp.float32)

    # --- f32 weights: exact parity with the PyTorch module -----------------
    prepared = prepare_timestep_embedding_params(params)
    out = jax.block_until_ready(timestep_embedding(sample, condition, prepared))
    ref = _reference(sample, condition, params)
    assert out.shape == (B, out_dim)
    assert jnp.allclose(out, ref, atol=1e-4, rtol=1e-4), \
        float(jnp.max(jnp.abs(out - ref)))

    # --- condition=None path (module with cond_proj_dim=None) --------------
    params_nc = {kk: v for kk, v in params.items() if kk != "cond_proj_w"}
    prepared_nc = prepare_timestep_embedding_params(params_nc)
    out_nc = jax.block_until_ready(timestep_embedding(sample, None, prepared_nc))
    ref_nc = _reference(sample, None, params_nc)
    assert jnp.allclose(out_nc, ref_nc, atol=1e-4, rtol=1e-4)

    # Condition supplied but module has no cond_proj -> ignored, not an error.
    out_ig = jax.block_until_ready(timestep_embedding(sample, condition, prepared_nc))
    assert jnp.allclose(out_ig, ref_nc, atol=1e-4, rtol=1e-4)

    # --- bf16 weights (recommended DMA-bound deployment path) --------------
    prepared_bf16 = prepare_timestep_embedding_params(params, weight_dtype=jnp.bfloat16)
    out_bf16 = jax.block_until_ready(
        timestep_embedding(sample, condition, prepared_bf16))
    assert jnp.allclose(out_bf16, ref, atol=5e-2, rtol=5e-2), \
        float(jnp.max(jnp.abs(out_bf16 - ref)))

    print("KERNEL_OK")
</pallas_src>

<mosaic_0001>
module attributes {stable_mosaic.version = 11 : i64} {
  func.func @_timestep_embedding_kernel(%arg0: i32, %arg1: i32, %arg2: memref<8x48xf32, #tpu.memory_space<vmem>>, %arg3: memref<48x128xf32, #tpu.memory_space<vmem>>, %arg4: memref<1x128xf32, #tpu.memory_space<vmem>>, %arg5: memref<128x128xf32, #tpu.memory_space<vmem>>, %arg6: memref<1x128xf32, #tpu.memory_space<vmem>>, %arg7: memref<8x128xf32, #tpu.memory_space<vmem>>) attributes {dimension_semantics = [#tpu.dimension_semantics<parallel>, #tpu.dimension_semantics<arbitrary>], iteration_bounds = array<i64: 1, 1>, scalar_prefetch = 0 : i64, scratch_operands = 0 : i64, tpu.core_type = #tpu.core_type<tc>, window_params = [{transform_indices = @transform_0, window_bounds = array<i64: 8, 48>}, {pipeline_mode = #tpu.pipeline_mode<synchronous>, transform_indices = @transform_1, window_bounds = array<i64: 48, 128>}, {pipeline_mode = #tpu.pipeline_mode<synchronous>, transform_indices = @transform_2, window_bounds = array<i64: 1, 128>}, {pipeline_mode = #tpu.pipeline_mode<synchronous>, transform_indices = @transform_3, window_bounds = array<i64: 128, 128>}, {pipeline_mode = #tpu.pipeline_mode<synchronous>, transform_indices = @transform_4, window_bounds = array<i64: 1, 128>}, {transform_indices = @transform_5, window_bounds = array<i64: 8, 128>}]} {
    %c0 = arith.constant 0 : index
    %c0_0 = arith.constant 0 : index
    %0 = vector.load %arg2[%c0, %c0_0] : memref<8x48xf32, #tpu.memory_space<vmem>>, vector<8x48xf32>
    %c0_1 = arith.constant 0 : index
    %c0_2 = arith.constant 0 : index
    %1 = vector.load %arg3[%c0_1, %c0_2] : memref<48x128xf32, #tpu.memory_space<vmem>>, vector<48x128xf32>
    %cst = arith.constant dense<0.000000e+00> : vector<8x128xf32>
    %2 = tpu.matmul %0, %1, %cst {dimension_numbers = #tpu.dot_dimension_numbers<[1], [0], [0], [1], [0, 0, 1, 1], [], []>} : vector<8x48xf32>, vector<48x128xf32>, vector<8x128xf32> -> vector<8x128xf32>
    %c0_3 = arith.constant 0 : index
    %c0_4 = arith.constant 0 : index
    %3 = vector.load %arg4[%c0_3, %c0_4] : memref<1x128xf32, #tpu.memory_space<vmem>>, vector<1x128xf32>
    %4 = vector.broadcast %3 : vector<1x128xf32> to vector<8x128xf32>
    %5 = arith.addf %2, %4 : vector<8x128xf32>
    %6 = arith.negf %5 : vector<8x128xf32>
    %7 = math.exp %6 : vector<8x128xf32>
    %cst_5 = arith.constant 1.000000e+00 : f32
    %8 = vector.broadcast %cst_5 : f32 to vector<8x128xf32>
    %9 = arith.addf %8, %7 : vector<8x128xf32>
    %10 = arith.divf %8, %9 : vector<8x128xf32>
    %11 = arith.mulf %5, %10 : vector<8x128xf32>
    %c0_6 = arith.constant 0 : index
    %c0_7 = arith.constant 0 : index
    %12 = vector.load %arg5[%c0_6, %c0_7] : memref<128x128xf32, #tpu.memory_space<vmem>>, vector<128x128xf32>
    %cst_8 = arith.constant dense<0.000000e+00> : vector<8x128xf32>
    %13 = tpu.matmul %11, %12, %cst_8 {dimension_numbers = #tpu.dot_dimension_numbers<[1], [0], [0], [1], [0, 0, 1, 1], [], []>} : vector<8x128xf32>, vector<128x128xf32>, vector<8x128xf32> -> vector<8x128xf32>
    %c0_9 = arith.constant 0 : index
    %c0_10 = arith.constant 0 : index
    %14 = vector.load %arg6[%c0_9, %c0_10] : memref<1x128xf32, #tpu.memory_space<vmem>>, vector<1x128xf32>
    %15 = vector.broadcast %14 : vector<1x128xf32> to vector<8x128xf32>
    %16 = arith.addf %13, %15 : vector<8x128xf32>
    %c0_11 = arith.constant 0 : index
    %c0_12 = arith.constant 0 : index
    %17 = vector.load %arg7[%c0_11, %c0_12] : memref<8x128xf32, #tpu.memory_space<vmem>>, vector<8x128xf32>
    tpu.vector_store %arg7[%c0_11, %c0_12], %16 {strides = array<i32>} : memref<8x128xf32, #tpu.memory_space<vmem>>, vector<8x128xf32>,
    return
  }
  func.func @transform_0(%arg0: i32, %arg1: i32) -> (i32, i32) {
    %c0_i32 = arith.constant 0 : i32
    %c0_i32_0 = arith.constant 0 : i32
    return %arg1, %c0_i32 : i32, i32
  }
  func.func @transform_1(%arg0: i32, %arg1: i32) -> (i32, i32) {
    %c0_i32 = arith.constant 0 : i32
    %c0_i32_0 = arith.constant 0 : i32
    %c0_i32_1 = arith.constant 0 : i32
    return %c0_i32, %c0_i32_0 : i32, i32
  }
  func.func @transform_2(%arg0: i32, %arg1: i32) -> (i32, i32) {
    %c0_i32 = arith.constant 0 : i32
    %c0_i32_0 = arith.constant 0 : i32
    %c0_i32_1 = arith.constant 0 : i32
    return %c0_i32, %c0_i32_0 : i32, i32
  }
  func.func @transform_3(%arg0: i32, %arg1: i32) -> (i32, i32) {
    %c0_i32 = arith.constant 0 : i32
    %c0_i32_0 = arith.constant 0 : i32
    return %c0_i32, %arg0 : i32, i32
  }
  func.func @transform_4(%arg0: i32, %arg1: i32) -> (i32, i32) {
    %c0_i32 = arith.constant 0 : i32
    %c0_i32_0 = arith.constant 0 : i32
    return %c0_i32, %arg0 : i32, i32
  }
  func.func @transform_5(%arg0: i32, %arg1: i32) -> (i32, i32) {
    %c0_i32 = arith.constant 0 : i32
    return %arg1, %arg0 : i32, i32
  }
}

</mosaic_0001>

<llo_original>
// kernel: tpu_custom_call.1
$region0: #{tpu_custom_call.1}
  #allocation0 [shape = 'u32[]', space=smem, size = 0x4, offset = 0x4, fixed_abs, tag = 'smem constant byte address 0x4 - core index']
  #allocation1 [shape = 'u32[72,128]{1,0:T(1,128)}', space=vmem, size = 0x9000, scoped, tag = 'internal scratch']
  %s0 = inlined_call_operand.hbm [shape: f32[8,48], index: 0, kind: input, shape index: {}]
  %s1 = inlined_call_operand.hbm [shape: f32[48,128], index: 1, kind: input, shape index: {}]
  %s2 = inlined_call_operand.vmem [shape: f32[1,128], index: 2, kind: input, shape index: {}]
  %s3 = inlined_call_operand.hbm [shape: f32[128,128], index: 3, kind: input, shape index: {}]
  %s4 = inlined_call_operand.vmem [shape: f32[1,128], index: 4, kind: input, shape index: {}]
  %s5 = inlined_call_operand.hbm [shape: f32[8,128], index: 5, kind: output, shape index: {}]
  %s6 = sld [smem:[#allocation0]]
  $region42: #{tpu_custom_call.1} parent=0
    _
  %s8 = ssub.s32 1, %s6
  %s9 = scalar_select 0, %s8, %s6
  $region1: #{tpu_custom_call.1} parent=0
    #allocation2 [shape = 'u8[4096]{0}', space=vmem, size = 0x1000, scoped, tag = 'input window, operand 0, single buffered']
    #allocation3 [shape = 's32[1]{0}', space=sflag, size = 0x4, scoped, tag = 'scoped memory for tpu_custom_call.1']
    #allocation4 [shape = 's32[1]{0}', space=sflag, size = 0x4, scoped, tag = 'scoped memory for tpu_custom_call.1']
    #allocation5 [shape = 'u8[24576]{0}', space=vmem, size = 0x6000, scoped, tag = 'input window, operand 1, single buffered']
    #allocation6 [shape = 's32[1]{0}', space=sflag, size = 0x4, scoped, tag = 'scoped memory for tpu_custom_call.1']
    #allocation7 [shape = 'u8[65536]{0}', space=vmem, size = 0x10000, scoped, tag = 'input window, operand 3, single buffered']
    #allocation8 [shape = 'u8[4096]{0}', space=vmem, size = 0x1000, scoped, tag = 'output window, operand 0, single buffered']
    %10 = vsyncpa [#allocation3], 0
    %11 = vsyncpa [#allocation6], 0
    %12 = vsyncpa [#allocation4], 0
    // Predicated region
    $region2: #{tpu_custom_call.1} parent=1 // pred_check
      _
    $region3: #{tpu_custom_call.1} parent=1 // pred_check_branch
      %14 = sbr.rel (0) target = $region5
    $region4: #{tpu_custom_call.1} parent=1 // pred_region
      %16 = vsyncadd [#allocation3], 0
      %s18 = sshll.u32 %s0, 4
      %s19 = int_to_ptr.hbm [resolvable:$true] %s18
      %s20 = sshll.u32 [#allocation2], 4
      %s21 = int_to_ptr.vmem [resolvable:$true] %s20
      %23 = dma.hbm_to_vmem [thread:$0]  %s19, 128, %s21, [#allocation3]
    $region5: #{tpu_custom_call.1} parent=1 // pred_fallthru
      _
    // Predicated region
    $region6: #{tpu_custom_call.1} parent=1 // pred_check
      _
    $region7: #{tpu_custom_call.1} parent=1 // pred_check_branch
      %25 = sbr.rel (0) target = $region9
    $region8: #{tpu_custom_call.1} parent=1 // pred_region
      %27 = vsyncadd [#allocation6], 0
      %s28 = sshll.u32 %s1, 4
      %s29 = int_to_ptr.hbm [resolvable:$true] %s28
      %s30 = sshll.u32 [#allocation5], 4
      %s31 = int_to_ptr.vmem [resolvable:$true] %s30
      %36 = dma.hbm_to_vmem [thread:$0]  %s29, 768, %s31, [#allocation6], 128, 128, 8
    $region9: #{tpu_custom_call.1} parent=1 // pred_fallthru
      _
    // Predicated region
    $region10: #{tpu_custom_call.1} parent=1 // pred_check
      _
    $region11: #{tpu_custom_call.1} parent=1 // pred_check_branch
      %38 = sbr.rel (0) target = $region13
    $region12: #{tpu_custom_call.1} parent=1 // pred_region
      _
    $region13: #{tpu_custom_call.1} parent=1 // pred_fallthru
      _
    // Predicated region
    $region14: #{tpu_custom_call.1} parent=1 // pred_check
      _
    $region15: #{tpu_custom_call.1} parent=1 // pred_check_branch
      %40 = sbr.rel (0) target = $region17
    $region16: #{tpu_custom_call.1} parent=1 // pred_region
      %42 = vsyncadd [#allocation6], 0
      %s43 = sshll.u32 %s3, 4
      %s44 = int_to_ptr.hbm [resolvable:$true] %s43
      %s45 = sshll.u32 [#allocation7], 4
      %s46 = int_to_ptr.vmem [resolvable:$true] %s45
      %51 = dma.hbm_to_vmem [thread:$0]  %s44, 2048, %s46, [#allocation6], 128, 128, 8
    $region17: #{tpu_custom_call.1} parent=1 // pred_fallthru
      _
    // Predicated region
    $region18: #{tpu_custom_call.1} parent=1 // pred_check
      _
    $region19: #{tpu_custom_call.1} parent=1 // pred_check_branch
      %53 = sbr.rel (0) target = $region21
    $region20: #{tpu_custom_call.1} parent=1 // pred_region
      _
    $region21: #{tpu_custom_call.1} parent=1 // pred_fallthru
      _
    // Predicated region
    $region22: #{tpu_custom_call.1} parent=1 // pred_check
      _
    $region23: #{tpu_custom_call.1} parent=1 // pred_check_branch
      %55 = sbr.rel (0) target = $region25
    $region24: #{tpu_custom_call.1} parent=1 // pred_region
      %57 = dma.done [#allocation3], 128
    $region25: #{tpu_custom_call.1} parent=1 // pred_fallthru
      _
    // Predicated region
    $region26: #{tpu_custom_call.1} parent=1 // pred_check
      _
    $region27: #{tpu_custom_call.1} parent=1 // pred_check_branch
      %59 = sbr.rel (0) target = $region29
    $region28: #{tpu_custom_call.1} parent=1 // pred_region
      %61 = dma.done [#allocation6], 768
    $region29: #{tpu_custom_call.1} parent=1 // pred_fallthru
      _
    // Predicated region
    $region30: #{tpu_custom_call.1} parent=1 // pred_check
      _
    $region31: #{tpu_custom_call.1} parent=1 // pred_check_branch
      %63 = sbr.rel (0) target = $region33
    $region32: #{tpu_custom_call.1} parent=1 // pred_region
      %65 = dma.done [#allocation6], 2048
    $region33: #{tpu_custom_call.1} parent=1 // pred_fallthru
      _
    %v66 = vld [vmem:[#allocation2] sm:$0xff]
    %v67 = vld [vmem:[#allocation5] sm:$0xff]
    %v68 = vld [vmem:[#allocation5 + $0x8] sm:$0xff]
    %v69 = vld [vmem:[#allocation5 + $0x10] sm:$0xff]
    %v70 = vld [vmem:[#allocation5 + $0x18] sm:$0xff]
    %v71 = vld [vmem:[#allocation5 + $0x20] sm:$0xff]
    %v72 = vld [vmem:[#allocation5 + $0x28] sm:$0xff]
    %v73 = vld [vmem:[%s2] sm:$0x1]
    %v75 = vperm.slane %v73, 0
    %vm77 = vcmask 392192
    %v79 = vsel %vm77, %v66, 0
    %81 = vmatpush.msra.mxu0 0.0
    %82 = vmatpush.msra.mxu0 0.0
    %83 = vmatpush.msra.mxu0 0.0
    %84 = vmatpush.msra.mxu0 0.0
    %85 = vmatpush.msra.mxu0 0.0
    %86 = vmatpush.msra.mxu0 0.0
    %87 = vmatpush.msra.mxu0 0.0
    %88 = vmatpush.msra.mxu0 0.0
    %89 = vmatpush.msra.mxu0 0.0
    %90 = vmatpush.msra.mxu0 0.0
    %91 = vmatpush.msra.mxu0 %v72
    %92 = vmatpush.msra.mxu0 %v71
    %93 = vmatpush.msra.mxu0 %v70
    %94 = vmatpush.msra.mxu0 %v69
    %95 = vmatpush.msra.mxu0 %v68
    %96 = vmatpush.msra.mxu0 %v67
    %97 = vmatmul.f32.gmra.mxu0 %v79
    %v98 = vpop.f32.mrf.mxu0
    %v99 = vadd.f32 %v75, %v98
    %100 = vdwg.mxu0
    %v101 = vxor.u32 %v99, 2147483648
    %v102 = vmul.f32 %v101, 1.442695
    %v103 = vpow.pop %v102
    %v104 = vadd.f32 %v103, 1.0
    %v105 = vrcp.pop %v104
    %v106 = vmul.f32 %v104, %v105
    %v107 = vsub.f32 1.0, %v106
    %v108 = vmul.f32 %v105, %v107
    %v109 = vadd.f32 %v105, %v108
    %vm110 = vweird.f32 %v104
    %vm111 = vweird.f32 %v105
    %vm112 = vmor %vm110, %vm111
    %v113 = vsel %vm112, %v105, %v109
    %v114 = vand.u32 2147483647, %v104
    %vm115 = vcmp.eq.f32.partialorder %v114, 8.507059e+37
    %v116 = vand.u32 %v104, 2147483648
    %v117 = vor.u32 1.1754944e-38, %v116
    %v118 = vsel %vm115, %v117, %v113
    %v119 = vmul.f32 1.0, %v118
    %v120 = vmul.f32 %v99, %v119
    %v121 = vld [vmem:[#allocation7] sm:$0xff]
    %v122 = vld [vmem:[#allocation7 + $0x8] sm:$0xff]
    %v123 = vld [vmem:[#allocation7 + $0x10] sm:$0xff]
    %v124 = vld [vmem:[#allocation7 + $0x18] sm:$0xff]
    %v125 = vld [vmem:[#allocation7 + $0x20] sm:$0xff]
    %v126 = vld [vmem:[#allocation7 + $0x28] sm:$0xff]
    %v127 = vld [vmem:[#allocation7 + $0x30] sm:$0xff]
    %v128 = vld [vmem:[#allocation7 + $0x38] sm:$0xff]
    %v129 = vld [vmem:[#allocation7 + $0x40] sm:$0xff]
    %v130 = vld [vmem:[#allocation7 + $0x48] sm:$0xff]
    %v131 = vld [vmem:[#allocation7 + $0x50] sm:$0xff]
    %v132 = vld [vmem:[#allocation7 + $0x58] sm:$0xff]
    %v133 = vld [vmem:[#allocation7 + $0x60] sm:$0xff]
    %v134 = vld [vmem:[#allocation7 + $0x68] sm:$0xff]
    %v135 = vld [vmem:[#allocation7 + $0x70] sm:$0xff]
    %v136 = vld [vmem:[#allocation7 + $0x78] sm:$0xff]
    %v137 = vld [vmem:[%s4] sm:$0x1]
    %v139 = vperm.slane %v137, 0
    %141 = vmatpush.msra.mxu0 %v136
    %142 = vmatpush.msra.mxu0 %v135
    %143 = vmatpush.msra.mxu0 %v134
    %144 = vmatpush.msra.mxu0 %v133
    %145 = vmatpush.msra.mxu0 %v132
    %146 = vmatpush.msra.mxu0 %v131
    %147 = vmatpush.msra.mxu0 %v130
    %148 = vmatpush.msra.mxu0 %v129
    %149 = vmatpush.msra.mxu0 %v128
    %150 = vmatpush.msra.mxu0 %v127
    %151 = vmatpush.msra.mxu0 %v126
    %152 = vmatpush.msra.mxu0 %v125
    %153 = vmatpush.msra.mxu0 %v124
    %154 = vmatpush.msra.mxu0 %v123
    %155 = vmatpush.msra.mxu0 %v122
    %156 = vmatpush.msra.mxu0 %v121
    %157 = vmatmul.f32.gmra.mxu0 %v120
    %v158 = vpop.f32.mrf.mxu0
    %v159 = vadd.f32 %v139, %v158
    %160 = vdwg.mxu0
    %161 = vst [vmem:[#allocation8] sm:$0xff] %v159
    // Predicated region
    $region34: #{tpu_custom_call.1} parent=1 // pred_check
      _
    $region35: #{tpu_custom_call.1} parent=1 // pred_check_branch
      %163 = sbr.rel (0) target = $region37
    $region36: #{tpu_custom_call.1} parent=1 // pred_region
      %165 = vsyncadd [#allocation4], 0
      %s167 = sshll.u32 [#allocation8], 4
      %s168 = int_to_ptr.vmem [resolvable:$true] %s167
      %s169 = sshll.u32 %s5, 4
      %s170 = int_to_ptr.hbm [resolvable:$true] %s169
      %172 = dma.vmem_to_hbm [thread:$0]  %s168, 128, %s170, [#allocation4]
    $region37: #{tpu_custom_call.1} parent=1 // pred_fallthru
      _
    // Predicated region
    $region38: #{tpu_custom_call.1} parent=1 // pred_check
      _
    $region39: #{tpu_custom_call.1} parent=1 // pred_check_branch
      %174 = sbr.rel (0) target = $region41
    $region40: #{tpu_custom_call.1} parent=1 // pred_region
      %176 = dma.done [#allocation4], 128
    $region41: #{tpu_custom_call.1} parent=1 // pred_fallthru
      _
    %177 = vsyncpa [#allocation3], 1
    %178 = vsyncpa [#allocation6], 1
    %179 = vsyncpa [#allocation4], 1

</llo_original>
